<compile_context>
chip_gen: v7x
topology: tpu7x:2x2x1
jax: 0.10.0
libtpu: 0.0.40
codegen_flags: <defaults>
</compile_context>

<pallas_src>
import functools

import jax
import jax.numpy as jnp
from jax.experimental import pallas as pl
from jax.experimental.pallas import tpu as pltpu


def _round_up(x, m):
    return (x + m - 1) // m * m


def _cdiv(a, b):
    return (a + b - 1) // b


def _mish(x):
    # mish(x) = x * tanh(softplus(x)), rewritten with a single exp:
    #   u = exp(-|x|)
    #   x >= 0: tanh(softplus(x)) = (1 + 2u)   / (1 + 2u + 2u^2)
    #   x <  0: tanh(softplus(x)) = (u^2 + 2u) / (u^2 + 2u + 2)
    # One EUP exp + one EUP approx-reciprocal per element (den >= 1 always).
    u = jnp.exp(-jnp.abs(x))
    u2 = u * u
    pos = x >= 0.0
    num = jnp.where(pos, 1.0 + 2.0 * u, u2 + 2.0 * u)
    den = jnp.where(pos, 1.0 + 2.0 * u + 2.0 * u2, u2 + 2.0 * u + 2.0)
    return x * num * pl.reciprocal(den, approx=True)


def _mlp_kernel(x_ref, w1_ref, b1_ref, w2_ref, b2_ref, w3_ref, b3_ref, o_ref,
                *, num_actions, padded_actions):
    # Single cast: load x straight into the matmul input dtype.
    x = x_ref[...].astype(w1_ref.dtype)

    # Layer 1: Linear + Mish (f32 accumulation on the MXU).
    h1 = jnp.dot(x, w1_ref[...], preferred_element_type=jnp.float32) + b1_ref[...]
    h1 = _mish(h1)

    # Layer 2: Linear + Mish.
    h2 = jnp.dot(h1.astype(w2_ref.dtype), w2_ref[...],
                 preferred_element_type=jnp.float32) + b2_ref[...]
    h2 = _mish(h2)

    # Layer 3: Linear + LeakyReLU (slope 0.01). max(x, 0.01x) == LeakyReLU.
    logits = jnp.dot(h2.astype(w3_ref.dtype), w3_ref[...],
                     preferred_element_type=jnp.float32) + b3_ref[...]
    logits = jnp.maximum(logits, 0.01 * logits)

    # Mask the lane-padding columns only when padding actually exists
    # (static Python branch -> compiles away when action_dim % 128 == 0).
    if num_actions != padded_actions:
        lane = jax.lax.broadcasted_iota(jnp.int32, logits.shape, 1)
        logits = jnp.where(lane < num_actions, logits, jnp.float32(-1e30))

    # Softmax over dim=-1. Exact reciprocal here (one EUP op per row) so the
    # output is a true probability distribution; the approx rcp stays in mish.
    m = jnp.max(logits, axis=-1, keepdims=True)
    e = jnp.exp(logits - m)
    probs = e / jnp.sum(e, axis=-1, keepdims=True)

    o_ref[...] = probs.astype(o_ref.dtype)


def _vmem_capacity_bytes():
    """Physical VMEM per TensorCore; conservative 64 MiB fallback (v7x)."""
    try:
        return int(pltpu.get_tpu_info().vmem_capacity_bytes)
    except Exception:
        return 64 << 20


def three_layer_mlp(x, params, *, batch_tile=None, weights_dtype=None,
                    out_dtype=jnp.float32):
    """x: (B, state_dim) float32. params: dict of w1,b1,w2,b2,w3,b3.

    batch_tile:    rows per grid step. Default: 256 on 64 MiB-VMEM chips (v7x),
                   512 on 128 MiB chips (v5e/v6e).
    weights_dtype: None -> auto (bf16 weights when hidden_dim >= 256, else f32).
                   bf16 halves resident VMEM / weight HBM traffic on every
                   generation; accumulation stays f32.
    out_dtype:     probabilities dtype (bf16 halves output stores/writeback).
    """
    w1, b1, w2, b2, w3, b3 = (params[k] for k in ("w1", "b1", "w2", "b2", "w3", "b3"))
    B, S = x.shape
    H = w1.shape[1]
    A = w3.shape[1]

    if weights_dtype is None:
        weights_dtype = jnp.bfloat16 if H >= 256 else jnp.float32
    w1, w2, w3 = (w.astype(weights_dtype) for w in (w1, w2, w3))

    # Lane-dense output: pad action dim to a multiple of 128 so output stores
    # are full unmasked vregs; padded lanes are masked to -inf pre-softmax.
    A_pad = _round_up(A, 128)
    if A_pad != A:
        w3 = jnp.pad(w3, ((0, 0), (0, A_pad - A)))
        b3 = jnp.pad(b3, ((0, 0), (0, A_pad - A)))

    vmem_cap = _vmem_capacity_bytes()
    small_vmem = vmem_cap <= (64 << 20)          # v7x-class TC
    if batch_tile is None:
        batch_tile = 256 if small_vmem else 512  # bigger tiles amortize step overhead

    # Batch tiling: grid over the batch; x/out double-buffered by the pipeline,
    # weights resident in VMEM.
    TB = min(_round_up(B, 8), batch_tile)
    if _cdiv(B, TB) < 2 and B > 8:
        # Ensure >=2 grid steps so v7x's two TensorCores can both get work.
        TB = _round_up(_cdiv(B, 2), 8)
    B_pad = _round_up(B, TB)
    if B_pad != B:
        x = jnp.pad(x, ((0, B_pad - B), (0, 0)))
    grid = (B_pad // TB,)

    x_isz = jnp.dtype(x.dtype).itemsize
    w_isz = jnp.dtype(weights_dtype).itemsize
    o_isz = jnp.dtype(out_dtype).itemsize

    def vmem_limit(weight_bufs):
        # weight/bias operands x their buffer count + double-buffered x/out
        # blocks + f32 intermediates + compiler-internal scratch headroom.
        weights = ((S * H + H * H + H * A_pad) * w_isz
                   + (H + H + A_pad) * 4) * weight_bufs
        io = 2 * TB * S * x_isz + 2 * TB * A_pad * o_isz
        inter = 4 * TB * H * 4
        budget = weights + io + inter + (8 << 20)
        cap = (52 << 20) if small_vmem else (112 << 20)
        return int(min(max(budget, 32 << 20), cap))

    cost = pl.CostEstimate(
        flops=2 * B_pad * (S * H + H * H + H * A_pad) + 12 * B_pad * (2 * H + A_pad),
        transcendentals=B_pad * (4 * H + A_pad + 1),  # mish exp+rcp, softmax exp, row rcp
        bytes_accessed=int(B_pad * S * x_isz
                           + (S * H + H * H + H * A_pad) * w_isz
                           + (2 * H + A_pad) * 4
                           + B_pad * A_pad * o_isz),
    )

    kernel = functools.partial(_mlp_kernel, num_actions=A, padded_actions=A_pad)

    def build_call(single_buffer_weights):
        if single_buffer_weights:
            resident = dict(pipeline_mode=pl.Buffered(1))
        else:
            resident = {}
        const = lambda i: (0, 0)
        in_specs = [
            pl.BlockSpec((TB, S), lambda i: (i, 0)),           # x: tiled over batch
            pl.BlockSpec((S, H), const, **resident),           # w1: resident
            pl.BlockSpec((1, H), const, **resident),           # b1
            pl.BlockSpec((H, H), const, **resident),           # w2
            pl.BlockSpec((1, H), const, **resident),           # b2
            pl.BlockSpec((H, A_pad), const, **resident),       # w3 (lane-padded)
            pl.BlockSpec((1, A_pad), const, **resident),       # b3 (lane-padded)
        ]
        out_specs = pl.BlockSpec((TB, A_pad), lambda i: (i, 0))
        return pl.pallas_call(
            kernel,
            out_shape=jax.ShapeDtypeStruct((B_pad, A_pad), out_dtype),
            grid_spec=pltpu.PrefetchScalarGridSpec(
                num_scalar_prefetch=0,
                grid=grid,
                in_specs=in_specs,
                out_specs=out_specs,
            ),
            compiler_params=pltpu.CompilerParams(
                dimension_semantics=("parallel",),  # megacore batch split on v7x
                vmem_limit_bytes=vmem_limit(1 if single_buffer_weights else 2),
            ),
            cost_estimate=cost,
        )(x, w1, b1, w2, b2, w3, b3)

    try:
        # Preferred: resident weights single-buffered (halves their VMEM).
        out = jax.block_until_ready(build_call(True))
    except Exception:
        # Fallback: default double-buffering if Buffered(1) is rejected.
        out = build_call(False)

    return out[:B, :A]


def init_params(key, state_dim, action_dim, hidden_dim):
    ks = jax.random.split(key, 6)

    def lin(kw, kb, fan_in, fan_out):
        # PyTorch-style uniform init with bound 1/sqrt(fan_in).
        bound = 1.0 / jnp.sqrt(jnp.float32(fan_in))
        w = jax.random.uniform(kw, (fan_in, fan_out), jnp.float32, -bound, bound)
        b = jax.random.uniform(kb, (1, fan_out), jnp.float32, -bound, bound)
        return w, b

    w1, b1 = lin(ks[0], ks[1], state_dim, hidden_dim)
    w2, b2 = lin(ks[2], ks[3], hidden_dim, hidden_dim)
    w3, b3 = lin(ks[4], ks[5], hidden_dim, action_dim)
    return {"w1": w1, "b1": b1, "w2": w2, "b2": b2, "w3": w3, "b3": b3}


if __name__ == "__main__":
    key = jax.random.PRNGKey(0)
    k_x, k_p = jax.random.split(key)

    batch, state_dim, hidden_dim, action_dim = 8, 16, 32, 8
    x = jax.random.normal(k_x, (batch, state_dim), dtype=jnp.float32)
    params = init_params(k_p, state_dim, action_dim, hidden_dim)

    out = jax.block_until_ready(three_layer_mlp(x, params))

    # Pure-JAX reference (exact mish/softmax). The kernel uses the EUP
    # approximate reciprocal inside mish only, so tolerances are relaxed;
    # real bugs show up as O(0.1-1) differences.
    def ref(x, p):
        def mish(v):
            return v * jnp.tanh(jax.nn.softplus(v))
        h = mish(x @ p["w1"] + p["b1"])
        h = mish(h @ p["w2"] + p["b2"])
        lg = h @ p["w3"] + p["b3"]
        lg = jnp.where(lg >= 0, lg, 0.01 * lg)
        return jax.nn.softmax(lg, axis=-1)

    ref_out = ref(x, params)
    assert out.shape == (batch, action_dim)
    assert jnp.allclose(out, ref_out, atol=1e-2, rtol=1e-2)
    # Exact softmax reciprocal -> rows sum to 1 to fp precision.
    assert jnp.allclose(jnp.sum(out, axis=-1), 1.0, atol=1e-5)

    print("KERNEL_OK")
</pallas_src>

<mosaic_0001>
module attributes {stable_mosaic.version = 11 : i64} {
  func.func @_mlp_kernel(%arg0: i32, %arg1: memref<8x16xf32, #tpu.memory_space<vmem>>, %arg2: memref<16x32xf32, #tpu.memory_space<vmem>>, %arg3: memref<1x32xf32, #tpu.memory_space<vmem>>, %arg4: memref<32x32xf32, #tpu.memory_space<vmem>>, %arg5: memref<1x32xf32, #tpu.memory_space<vmem>>, %arg6: memref<32x128xf32, #tpu.memory_space<vmem>>, %arg7: memref<1x128xf32, #tpu.memory_space<vmem>>, %arg8: memref<8x128xf32, #tpu.memory_space<vmem>>) attributes {dimension_semantics = [#tpu.dimension_semantics<parallel>], iteration_bounds = array<i64: 1>, scalar_prefetch = 0 : i64, scratch_operands = 0 : i64, tpu.core_type = #tpu.core_type<tc>, window_params = [{transform_indices = @transform_0, window_bounds = array<i64: 8, 16>}, {pipeline_mode = #tpu.pipeline_mode<synchronous>, transform_indices = @transform_1, window_bounds = array<i64: 16, 32>}, {pipeline_mode = #tpu.pipeline_mode<synchronous>, transform_indices = @transform_2, window_bounds = array<i64: 1, 32>}, {pipeline_mode = #tpu.pipeline_mode<synchronous>, transform_indices = @transform_3, window_bounds = array<i64: 32, 32>}, {pipeline_mode = #tpu.pipeline_mode<synchronous>, transform_indices = @transform_4, window_bounds = array<i64: 1, 32>}, {pipeline_mode = #tpu.pipeline_mode<synchronous>, transform_indices = @transform_5, window_bounds = array<i64: 32, 128>}, {pipeline_mode = #tpu.pipeline_mode<synchronous>, transform_indices = @transform_6, window_bounds = array<i64: 1, 128>}, {transform_indices = @transform_7, window_bounds = array<i64: 8, 128>}]} {
    %c0 = arith.constant 0 : index
    %c0_0 = arith.constant 0 : index
    %0 = vector.load %arg1[%c0, %c0_0] : memref<8x16xf32, #tpu.memory_space<vmem>>, vector<8x16xf32>
    %c0_1 = arith.constant 0 : index
    %c0_2 = arith.constant 0 : index
    %1 = vector.load %arg2[%c0_1, %c0_2] : memref<16x32xf32, #tpu.memory_space<vmem>>, vector<16x32xf32>
    %cst = arith.constant dense<0.000000e+00> : vector<8x32xf32>
    %2 = tpu.matmul %0, %1, %cst {dimension_numbers = #tpu.dot_dimension_numbers<[1], [0], [0], [1], [0, 0, 1, 1], [], []>} : vector<8x16xf32>, vector<16x32xf32>, vector<8x32xf32> -> vector<8x32xf32>
    %c0_3 = arith.constant 0 : index
    %c0_4 = arith.constant 0 : index
    %3 = vector.load %arg3[%c0_3, %c0_4] : memref<1x32xf32, #tpu.memory_space<vmem>>, vector<1x32xf32>
    %4 = vector.broadcast %3 : vector<1x32xf32> to vector<8x32xf32>
    %5 = arith.addf %2, %4 : vector<8x32xf32>
    %6 = math.absf %5 : vector<8x32xf32>
    %cst_5 = arith.constant 0.000000e+00 : f32
    %7 = vector.broadcast %cst_5 : f32 to vector<8x32xf32>
    %8 = arith.subf %7, %6 : vector<8x32xf32>
    %9 = math.exp %8 : vector<8x32xf32>
    %10 = arith.mulf %9, %9 : vector<8x32xf32>
    %cst_6 = arith.constant 0.000000e+00 : f32
    %11 = vector.broadcast %cst_6 : f32 to vector<8x32xf32>
    %12 = arith.cmpf oge, %5, %11 : vector<8x32xf32>
    %cst_7 = arith.constant 2.000000e+00 : f32
    %13 = vector.broadcast %cst_7 : f32 to vector<8x32xf32>
    %14 = arith.mulf %13, %9 : vector<8x32xf32>
    %cst_8 = arith.constant 1.000000e+00 : f32
    %15 = vector.broadcast %cst_8 : f32 to vector<8x32xf32>
    %16 = arith.addf %15, %14 : vector<8x32xf32>
    %cst_9 = arith.constant 2.000000e+00 : f32
    %17 = vector.broadcast %cst_9 : f32 to vector<8x32xf32>
    %18 = arith.mulf %17, %9 : vector<8x32xf32>
    %19 = arith.addf %10, %18 : vector<8x32xf32>
    %20 = arith.select %12, %16, %19 : vector<8x32xi1>, vector<8x32xf32>
    %cst_10 = arith.constant 2.000000e+00 : f32
    %21 = vector.broadcast %cst_10 : f32 to vector<8x32xf32>
    %22 = arith.mulf %21, %9 : vector<8x32xf32>
    %cst_11 = arith.constant 1.000000e+00 : f32
    %23 = vector.broadcast %cst_11 : f32 to vector<8x32xf32>
    %24 = arith.addf %23, %22 : vector<8x32xf32>
    %cst_12 = arith.constant 2.000000e+00 : f32
    %25 = vector.broadcast %cst_12 : f32 to vector<8x32xf32>
    %26 = arith.mulf %25, %10 : vector<8x32xf32>
    %27 = arith.addf %24, %26 : vector<8x32xf32>
    %cst_13 = arith.constant 2.000000e+00 : f32
    %28 = vector.broadcast %cst_13 : f32 to vector<8x32xf32>
    %29 = arith.mulf %28, %9 : vector<8x32xf32>
    %30 = arith.addf %10, %29 : vector<8x32xf32>
    %cst_14 = arith.constant 2.000000e+00 : f32
    %31 = vector.broadcast %cst_14 : f32 to vector<8x32xf32>
    %32 = arith.addf %30, %31 : vector<8x32xf32>
    %33 = arith.select %12, %27, %32 : vector<8x32xi1>, vector<8x32xf32>
    %34 = arith.mulf %5, %20 : vector<8x32xf32>
    %35 = tpu.reciprocal %33 {approx = true} : vector<8x32xf32> -> vector<8x32xf32>
    %36 = arith.mulf %34, %35 : vector<8x32xf32>
    %c0_15 = arith.constant 0 : index
    %c0_16 = arith.constant 0 : index
    %37 = vector.load %arg4[%c0_15, %c0_16] : memref<32x32xf32, #tpu.memory_space<vmem>>, vector<32x32xf32>
    %cst_17 = arith.constant dense<0.000000e+00> : vector<8x32xf32>
    %38 = tpu.matmul %36, %37, %cst_17 {dimension_numbers = #tpu.dot_dimension_numbers<[1], [0], [0], [1], [0, 0, 1, 1], [], []>} : vector<8x32xf32>, vector<32x32xf32>, vector<8x32xf32> -> vector<8x32xf32>
    %c0_18 = arith.constant 0 : index
    %c0_19 = arith.constant 0 : index
    %39 = vector.load %arg5[%c0_18, %c0_19] : memref<1x32xf32, #tpu.memory_space<vmem>>, vector<1x32xf32>
    %40 = vector.broadcast %39 : vector<1x32xf32> to vector<8x32xf32>
    %41 = arith.addf %38, %40 : vector<8x32xf32>
    %42 = math.absf %41 : vector<8x32xf32>
    %cst_20 = arith.constant 0.000000e+00 : f32
    %43 = vector.broadcast %cst_20 : f32 to vector<8x32xf32>
    %44 = arith.subf %43, %42 : vector<8x32xf32>
    %45 = math.exp %44 : vector<8x32xf32>
    %46 = arith.mulf %45, %45 : vector<8x32xf32>
    %cst_21 = arith.constant 0.000000e+00 : f32
    %47 = vector.broadcast %cst_21 : f32 to vector<8x32xf32>
    %48 = arith.cmpf oge, %41, %47 : vector<8x32xf32>
    %cst_22 = arith.constant 2.000000e+00 : f32
    %49 = vector.broadcast %cst_22 : f32 to vector<8x32xf32>
    %50 = arith.mulf %49, %45 : vector<8x32xf32>
    %cst_23 = arith.constant 1.000000e+00 : f32
    %51 = vector.broadcast %cst_23 : f32 to vector<8x32xf32>
    %52 = arith.addf %51, %50 : vector<8x32xf32>
    %cst_24 = arith.constant 2.000000e+00 : f32
    %53 = vector.broadcast %cst_24 : f32 to vector<8x32xf32>
    %54 = arith.mulf %53, %45 : vector<8x32xf32>
    %55 = arith.addf %46, %54 : vector<8x32xf32>
    %56 = arith.select %48, %52, %55 : vector<8x32xi1>, vector<8x32xf32>
    %cst_25 = arith.constant 2.000000e+00 : f32
    %57 = vector.broadcast %cst_25 : f32 to vector<8x32xf32>
    %58 = arith.mulf %57, %45 : vector<8x32xf32>
    %cst_26 = arith.constant 1.000000e+00 : f32
    %59 = vector.broadcast %cst_26 : f32 to vector<8x32xf32>
    %60 = arith.addf %59, %58 : vector<8x32xf32>
    %cst_27 = arith.constant 2.000000e+00 : f32
    %61 = vector.broadcast %cst_27 : f32 to vector<8x32xf32>
    %62 = arith.mulf %61, %46 : vector<8x32xf32>
    %63 = arith.addf %60, %62 : vector<8x32xf32>
    %cst_28 = arith.constant 2.000000e+00 : f32
    %64 = vector.broadcast %cst_28 : f32 to vector<8x32xf32>
    %65 = arith.mulf %64, %45 : vector<8x32xf32>
    %66 = arith.addf %46, %65 : vector<8x32xf32>
    %cst_29 = arith.constant 2.000000e+00 : f32
    %67 = vector.broadcast %cst_29 : f32 to vector<8x32xf32>
    %68 = arith.addf %66, %67 : vector<8x32xf32>
    %69 = arith.select %48, %63, %68 : vector<8x32xi1>, vector<8x32xf32>
    %70 = arith.mulf %41, %56 : vector<8x32xf32>
    %71 = tpu.reciprocal %69 {approx = true} : vector<8x32xf32> -> vector<8x32xf32>
    %72 = arith.mulf %70, %71 : vector<8x32xf32>
    %c0_30 = arith.constant 0 : index
    %c0_31 = arith.constant 0 : index
    %73 = vector.load %arg6[%c0_30, %c0_31] : memref<32x128xf32, #tpu.memory_space<vmem>>, vector<32x128xf32>
    %cst_32 = arith.constant dense<0.000000e+00> : vector<8x128xf32>
    %74 = tpu.matmul %72, %73, %cst_32 {dimension_numbers = #tpu.dot_dimension_numbers<[1], [0], [0], [1], [0, 0, 1, 1], [], []>} : vector<8x32xf32>, vector<32x128xf32>, vector<8x128xf32> -> vector<8x128xf32>
    %c0_33 = arith.constant 0 : index
    %c0_34 = arith.constant 0 : index
    %75 = vector.load %arg7[%c0_33, %c0_34] : memref<1x128xf32, #tpu.memory_space<vmem>>, vector<1x128xf32>
    %76 = vector.broadcast %75 : vector<1x128xf32> to vector<8x128xf32>
    %77 = arith.addf %74, %76 : vector<8x128xf32>
    %cst_35 = arith.constant 0.00999999977 : f32
    %78 = vector.broadcast %cst_35 : f32 to vector<8x128xf32>
    %79 = arith.mulf %78, %77 : vector<8x128xf32>
    %80 = arith.maximumf %77, %79 : vector<8x128xf32>
    %81 = tpu.iota {dimensions = array<i32: 1>} : vector<8x128xi32>
    %c8_i32 = arith.constant 8 : i32
    %82 = vector.broadcast %c8_i32 : i32 to vector<8x128xi32>
    %83 = arith.cmpi slt, %81, %82 : vector<8x128xi32>
    %cst_36 = arith.constant -1.000000e+30 : f32
    %84 = vector.broadcast %cst_36 : f32 to vector<8x128xf32>
    %85 = arith.select %83, %80, %84 : vector<8x128xi1>, vector<8x128xf32>
    %cst_37 = arith.constant dense<0xFF800000> : vector<8xf32>
    %86 = vector.multi_reduction <maximumf>, %85, %cst_37 [1] : vector<8x128xf32> to vector<8xf32>
    %87 = vector.shape_cast %86 : vector<8xf32> to vector<8x1xf32>
    %88 = vector.broadcast %87 : vector<8x1xf32> to vector<8x128xf32>
    %89 = arith.subf %85, %88 : vector<8x128xf32>
    %90 = math.exp %89 : vector<8x128xf32>
    %cst_38 = arith.constant dense<0.000000e+00> : vector<8xf32>
    %91 = vector.multi_reduction <add>, %90, %cst_38 [1] : vector<8x128xf32> to vector<8xf32>
    %92 = vector.shape_cast %91 : vector<8xf32> to vector<8x1xf32>
    %93 = vector.broadcast %92 : vector<8x1xf32> to vector<8x128xf32>
    %94 = arith.divf %90, %93 : vector<8x128xf32>
    %c0_39 = arith.constant 0 : index
    %c0_40 = arith.constant 0 : index
    %95 = vector.load %arg8[%c0_39, %c0_40] : memref<8x128xf32, #tpu.memory_space<vmem>>, vector<8x128xf32>
    tpu.vector_store %arg8[%c0_39, %c0_40], %94 {strides = array<i32>} : memref<8x128xf32, #tpu.memory_space<vmem>>, vector<8x128xf32>,
    return
  }
  func.func @transform_0(%arg0: i32) -> (i32, i32) {
    %c0_i32 = arith.constant 0 : i32
    %c0_i32_0 = arith.constant 0 : i32
    return %arg0, %c0_i32 : i32, i32
  }
  func.func @transform_1(%arg0: i32) -> (i32, i32) {
    %c0_i32 = arith.constant 0 : i32
    %c0_i32_0 = arith.constant 0 : i32
    %c0_i32_1 = arith.constant 0 : i32
    return %c0_i32, %c0_i32_0 : i32, i32
  }
  func.func @transform_2(%arg0: i32) -> (i32, i32) {
    %c0_i32 = arith.constant 0 : i32
    %c0_i32_0 = arith.constant 0 : i32
    %c0_i32_1 = arith.constant 0 : i32
    return %c0_i32, %c0_i32_0 : i32, i32
  }
  func.func @transform_3(%arg0: i32) -> (i32, i32) {
    %c0_i32 = arith.constant 0 : i32
    %c0_i32_0 = arith.constant 0 : i32
    %c0_i32_1 = arith.constant 0 : i32
    return %c0_i32, %c0_i32_0 : i32, i32
  }
  func.func @transform_4(%arg0: i32) -> (i32, i32) {
    %c0_i32 = arith.constant 0 : i32
    %c0_i32_0 = arith.constant 0 : i32
    %c0_i32_1 = arith.constant 0 : i32
    return %c0_i32, %c0_i32_0 : i32, i32
  }
  func.func @transform_5(%arg0: i32) -> (i32, i32) {
    %c0_i32 = arith.constant 0 : i32
    %c0_i32_0 = arith.constant 0 : i32
    %c0_i32_1 = arith.constant 0 : i32
    return %c0_i32, %c0_i32_0 : i32, i32
  }
  func.func @transform_6(%arg0: i32) -> (i32, i32) {
    %c0_i32 = arith.constant 0 : i32
    %c0_i32_0 = arith.constant 0 : i32
    %c0_i32_1 = arith.constant 0 : i32
    return %c0_i32, %c0_i32_0 : i32, i32
  }
  func.func @transform_7(%arg0: i32) -> (i32, i32) {
    %c0_i32 = arith.constant 0 : i32
    %c0_i32_0 = arith.constant 0 : i32
    return %arg0, %c0_i32 : i32, i32
  }
}

module attributes {stable_mosaic.version = 11 : i64} {
  func.func @_mlp_kernel(%arg0: i32, %arg1: memref<8x16xf32, #tpu.memory_space<vmem>>, %arg2: memref<16x32xf32, #tpu.memory_space<vmem>>, %arg3: memref<1x32xf32, #tpu.memory_space<vmem>>, %arg4: memref<32x32xf32, #tpu.memory_space<vmem>>, %arg5: memref<1x32xf32, #tpu.memory_space<vmem>>, %arg6: memref<32x128xf32, #tpu.memory_space<vmem>>, %arg7: memref<1x128xf32, #tpu.memory_space<vmem>>, %arg8: memref<8x128xf32, #tpu.memory_space<vmem>>) attributes {dimension_semantics = [#tpu.dimension_semantics<parallel>], iteration_bounds = array<i64: 1>, scalar_prefetch = 0 : i64, scratch_operands = 0 : i64, tpu.core_type = #tpu.core_type<tc>, window_params = [{transform_indices = @transform_0, window_bounds = array<i64: 8, 16>}, {pipeline_mode = #tpu.pipeline_mode<synchronous>, transform_indices = @transform_1, window_bounds = array<i64: 16, 32>}, {pipeline_mode = #tpu.pipeline_mode<synchronous>, transform_indices = @transform_2, window_bounds = array<i64: 1, 32>}, {pipeline_mode = #tpu.pipeline_mode<synchronous>, transform_indices = @transform_3, window_bounds = array<i64: 32, 32>}, {pipeline_mode = #tpu.pipeline_mode<synchronous>, transform_indices = @transform_4, window_bounds = array<i64: 1, 32>}, {pipeline_mode = #tpu.pipeline_mode<synchronous>, transform_indices = @transform_5, window_bounds = array<i64: 32, 128>}, {pipeline_mode = #tpu.pipeline_mode<synchronous>, transform_indices = @transform_6, window_bounds = array<i64: 1, 128>}, {transform_indices = @transform_7, window_bounds = array<i64: 8, 128>}]} {
    %c0 = arith.constant 0 : index
    %c0_0 = arith.constant 0 : index
    %0 = vector.load %arg1[%c0, %c0_0] : memref<8x16xf32, #tpu.memory_space<vmem>>, vector<8x16xf32>
    %c0_1 = arith.constant 0 : index
    %c0_2 = arith.constant 0 : index
    %1 = vector.load %arg2[%c0_1, %c0_2] : memref<16x32xf32, #tpu.memory_space<vmem>>, vector<16x32xf32>
    %cst = arith.constant dense<0.000000e+00> : vector<8x32xf32>
    %2 = tpu.matmul %0, %1, %cst {dimension_numbers = #tpu.dot_dimension_numbers<[1], [0], [0], [1], [0, 0, 1, 1], [], []>} : vector<8x16xf32>, vector<16x32xf32>, vector<8x32xf32> -> vector<8x32xf32>
    %c0_3 = arith.constant 0 : index
    %c0_4 = arith.constant 0 : index
    %3 = vector.load %arg3[%c0_3, %c0_4] : memref<1x32xf32, #tpu.memory_space<vmem>>, vector<1x32xf32>
    %4 = vector.broadcast %3 : vector<1x32xf32> to vector<8x32xf32>
    %5 = arith.addf %2, %4 : vector<8x32xf32>
    %6 = math.absf %5 : vector<8x32xf32>
    %cst_5 = arith.constant 0.000000e+00 : f32
    %7 = vector.broadcast %cst_5 : f32 to vector<8x32xf32>
    %8 = arith.subf %7, %6 : vector<8x32xf32>
    %9 = math.exp %8 : vector<8x32xf32>
    %10 = arith.mulf %9, %9 : vector<8x32xf32>
    %cst_6 = arith.constant 0.000000e+00 : f32
    %11 = vector.broadcast %cst_6 : f32 to vector<8x32xf32>
    %12 = arith.cmpf oge, %5, %11 : vector<8x32xf32>
    %cst_7 = arith.constant 2.000000e+00 : f32
    %13 = vector.broadcast %cst_7 : f32 to vector<8x32xf32>
    %14 = arith.mulf %13, %9 : vector<8x32xf32>
    %cst_8 = arith.constant 1.000000e+00 : f32
    %15 = vector.broadcast %cst_8 : f32 to vector<8x32xf32>
    %16 = arith.addf %15, %14 : vector<8x32xf32>
    %cst_9 = arith.constant 2.000000e+00 : f32
    %17 = vector.broadcast %cst_9 : f32 to vector<8x32xf32>
    %18 = arith.mulf %17, %9 : vector<8x32xf32>
    %19 = arith.addf %10, %18 : vector<8x32xf32>
    %20 = arith.select %12, %16, %19 : vector<8x32xi1>, vector<8x32xf32>
    %cst_10 = arith.constant 2.000000e+00 : f32
    %21 = vector.broadcast %cst_10 : f32 to vector<8x32xf32>
    %22 = arith.mulf %21, %9 : vector<8x32xf32>
    %cst_11 = arith.constant 1.000000e+00 : f32
    %23 = vector.broadcast %cst_11 : f32 to vector<8x32xf32>
    %24 = arith.addf %23, %22 : vector<8x32xf32>
    %cst_12 = arith.constant 2.000000e+00 : f32
    %25 = vector.broadcast %cst_12 : f32 to vector<8x32xf32>
    %26 = arith.mulf %25, %10 : vector<8x32xf32>
    %27 = arith.addf %24, %26 : vector<8x32xf32>
    %cst_13 = arith.constant 2.000000e+00 : f32
    %28 = vector.broadcast %cst_13 : f32 to vector<8x32xf32>
    %29 = arith.mulf %28, %9 : vector<8x32xf32>
    %30 = arith.addf %10, %29 : vector<8x32xf32>
    %cst_14 = arith.constant 2.000000e+00 : f32
    %31 = vector.broadcast %cst_14 : f32 to vector<8x32xf32>
    %32 = arith.addf %30, %31 : vector<8x32xf32>
    %33 = arith.select %12, %27, %32 : vector<8x32xi1>, vector<8x32xf32>
    %34 = arith.mulf %5, %20 : vector<8x32xf32>
    %35 = tpu.reciprocal %33 {approx = true} : vector<8x32xf32> -> vector<8x32xf32>
    %36 = arith.mulf %34, %35 : vector<8x32xf32>
    %c0_15 = arith.constant 0 : index
    %c0_16 = arith.constant 0 : index
    %37 = vector.load %arg4[%c0_15, %c0_16] : memref<32x32xf32, #tpu.memory_space<vmem>>, vector<32x32xf32>
    %cst_17 = arith.constant dense<0.000000e+00> : vector<8x32xf32>
    %38 = tpu.matmul %36, %37, %cst_17 {dimension_numbers = #tpu.dot_dimension_numbers<[1], [0], [0], [1], [0, 0, 1, 1], [], []>} : vector<8x32xf32>, vector<32x32xf32>, vector<8x32xf32> -> vector<8x32xf32>
    %c0_18 = arith.constant 0 : index
    %c0_19 = arith.constant 0 : index
    %39 = vector.load %arg5[%c0_18, %c0_19] : memref<1x32xf32, #tpu.memory_space<vmem>>, vector<1x32xf32>
    %40 = vector.broadcast %39 : vector<1x32xf32> to vector<8x32xf32>
    %41 = arith.addf %38, %40 : vector<8x32xf32>
    %42 = math.absf %41 : vector<8x32xf32>
    %cst_20 = arith.constant 0.000000e+00 : f32
    %43 = vector.broadcast %cst_20 : f32 to vector<8x32xf32>
    %44 = arith.subf %43, %42 : vector<8x32xf32>
    %45 = math.exp %44 : vector<8x32xf32>
    %46 = arith.mulf %45, %45 : vector<8x32xf32>
    %cst_21 = arith.constant 0.000000e+00 : f32
    %47 = vector.broadcast %cst_21 : f32 to vector<8x32xf32>
    %48 = arith.cmpf oge, %41, %47 : vector<8x32xf32>
    %cst_22 = arith.constant 2.000000e+00 : f32
    %49 = vector.broadcast %cst_22 : f32 to vector<8x32xf32>
    %50 = arith.mulf %49, %45 : vector<8x32xf32>
    %cst_23 = arith.constant 1.000000e+00 : f32
    %51 = vector.broadcast %cst_23 : f32 to vector<8x32xf32>
    %52 = arith.addf %51, %50 : vector<8x32xf32>
    %cst_24 = arith.constant 2.000000e+00 : f32
    %53 = vector.broadcast %cst_24 : f32 to vector<8x32xf32>
    %54 = arith.mulf %53, %45 : vector<8x32xf32>
    %55 = arith.addf %46, %54 : vector<8x32xf32>
    %56 = arith.select %48, %52, %55 : vector<8x32xi1>, vector<8x32xf32>
    %cst_25 = arith.constant 2.000000e+00 : f32
    %57 = vector.broadcast %cst_25 : f32 to vector<8x32xf32>
    %58 = arith.mulf %57, %45 : vector<8x32xf32>
    %cst_26 = arith.constant 1.000000e+00 : f32
    %59 = vector.broadcast %cst_26 : f32 to vector<8x32xf32>
    %60 = arith.addf %59, %58 : vector<8x32xf32>
    %cst_27 = arith.constant 2.000000e+00 : f32
    %61 = vector.broadcast %cst_27 : f32 to vector<8x32xf32>
    %62 = arith.mulf %61, %46 : vector<8x32xf32>
    %63 = arith.addf %60, %62 : vector<8x32xf32>
    %cst_28 = arith.constant 2.000000e+00 : f32
    %64 = vector.broadcast %cst_28 : f32 to vector<8x32xf32>
    %65 = arith.mulf %64, %45 : vector<8x32xf32>
    %66 = arith.addf %46, %65 : vector<8x32xf32>
    %cst_29 = arith.constant 2.000000e+00 : f32
    %67 = vector.broadcast %cst_29 : f32 to vector<8x32xf32>
    %68 = arith.addf %66, %67 : vector<8x32xf32>
    %69 = arith.select %48, %63, %68 : vector<8x32xi1>, vector<8x32xf32>
    %70 = arith.mulf %41, %56 : vector<8x32xf32>
    %71 = tpu.reciprocal %69 {approx = true} : vector<8x32xf32> -> vector<8x32xf32>
    %72 = arith.mulf %70, %71 : vector<8x32xf32>
    %c0_30 = arith.constant 0 : index
    %c0_31 = arith.constant 0 : index
    %73 = vector.load %arg6[%c0_30, %c0_31] : memref<32x128xf32, #tpu.memory_space<vmem>>, vector<32x128xf32>
    %cst_32 = arith.constant dense<0.000000e+00> : vector<8x128xf32>
    %74 = tpu.matmul %72, %73, %cst_32 {dimension_numbers = #tpu.dot_dimension_numbers<[1], [0], [0], [1], [0, 0, 1, 1], [], []>} : vector<8x32xf32>, vector<32x128xf32>, vector<8x128xf32> -> vector<8x128xf32>
    %c0_33 = arith.constant 0 : index
    %c0_34 = arith.constant 0 : index
    %75 = vector.load %arg7[%c0_33, %c0_34] : memref<1x128xf32, #tpu.memory_space<vmem>>, vector<1x128xf32>
    %76 = vector.broadcast %75 : vector<1x128xf32> to vector<8x128xf32>
    %77 = arith.addf %74, %76 : vector<8x128xf32>
    %cst_35 = arith.constant 0.00999999977 : f32
    %78 = vector.broadcast %cst_35 : f32 to vector<8x128xf32>
    %79 = arith.mulf %78, %77 : vector<8x128xf32>
    %80 = arith.maximumf %77, %79 : vector<8x128xf32>
    %81 = tpu.iota {dimensions = array<i32: 1>} : vector<8x128xi32>
    %c8_i32 = arith.constant 8 : i32
    %82 = vector.broadcast %c8_i32 : i32 to vector<8x128xi32>
    %83 = arith.cmpi slt, %81, %82 : vector<8x128xi32>
    %cst_36 = arith.constant -1.000000e+30 : f32
    %84 = vector.broadcast %cst_36 : f32 to vector<8x128xf32>
    %85 = arith.select %83, %80, %84 : vector<8x128xi1>, vector<8x128xf32>
    %cst_37 = arith.constant dense<0xFF800000> : vector<8xf32>
    %86 = vector.multi_reduction <maximumf>, %85, %cst_37 [1] : vector<8x128xf32> to vector<8xf32>
    %87 = vector.shape_cast %86 : vector<8xf32> to vector<8x1xf32>
    %88 = vector.broadcast %87 : vector<8x1xf32> to vector<8x128xf32>
    %89 = arith.subf %85, %88 : vector<8x128xf32>
    %90 = math.exp %89 : vector<8x128xf32>
    %cst_38 = arith.constant dense<0.000000e+00> : vector<8xf32>
    %91 = vector.multi_reduction <add>, %90, %cst_38 [1] : vector<8x128xf32> to vector<8xf32>
    %92 = vector.shape_cast %91 : vector<8xf32> to vector<8x1xf32>
    %93 = vector.broadcast %92 : vector<8x1xf32> to vector<8x128xf32>
    %94 = arith.divf %90, %93 : vector<8x128xf32>
    %c0_39 = arith.constant 0 : index
    %c0_40 = arith.constant 0 : index
    %95 = vector.load %arg8[%c0_39, %c0_40] : memref<8x128xf32, #tpu.memory_space<vmem>>, vector<8x128xf32>
    tpu.vector_store %arg8[%c0_39, %c0_40], %94 {strides = array<i32>} : memref<8x128xf32, #tpu.memory_space<vmem>>, vector<8x128xf32>,
    return
  }
  func.func @transform_0(%arg0: i32) -> (i32, i32) {
    %c0_i32 = arith.constant 0 : i32
    %c0_i32_0 = arith.constant 0 : i32
    return %arg0, %c0_i32 : i32, i32
  }
  func.func @transform_1(%arg0: i32) -> (i32, i32) {
    %c0_i32 = arith.constant 0 : i32
    %c0_i32_0 = arith.constant 0 : i32
    %c0_i32_1 = arith.constant 0 : i32
    return %c0_i32, %c0_i32_0 : i32, i32
  }
  func.func @transform_2(%arg0: i32) -> (i32, i32) {
    %c0_i32 = arith.constant 0 : i32
    %c0_i32_0 = arith.constant 0 : i32
    %c0_i32_1 = arith.constant 0 : i32
    return %c0_i32, %c0_i32_0 : i32, i32
  }
  func.func @transform_3(%arg0: i32) -> (i32, i32) {
    %c0_i32 = arith.constant 0 : i32
    %c0_i32_0 = arith.constant 0 : i32
    %c0_i32_1 = arith.constant 0 : i32
    return %c0_i32, %c0_i32_0 : i32, i32
  }
  func.func @transform_4(%arg0: i32) -> (i32, i32) {
    %c0_i32 = arith.constant 0 : i32
    %c0_i32_0 = arith.constant 0 : i32
    %c0_i32_1 = arith.constant 0 : i32
    return %c0_i32, %c0_i32_0 : i32, i32
  }
  func.func @transform_5(%arg0: i32) -> (i32, i32) {
    %c0_i32 = arith.constant 0 : i32
    %c0_i32_0 = arith.constant 0 : i32
    %c0_i32_1 = arith.constant 0 : i32
    return %c0_i32, %c0_i32_0 : i32, i32
  }
  func.func @transform_6(%arg0: i32) -> (i32, i32) {
    %c0_i32 = arith.constant 0 : i32
    %c0_i32_0 = arith.constant 0 : i32
    %c0_i32_1 = arith.constant 0 : i32
    return %c0_i32, %c0_i32_0 : i32, i32
  }
  func.func @transform_7(%arg0: i32) -> (i32, i32) {
    %c0_i32 = arith.constant 0 : i32
    %c0_i32_0 = arith.constant 0 : i32
    return %arg0, %c0_i32 : i32, i32
  }
}

</mosaic_0001>

<llo_original>
// kernel: tpu_custom_call.1
$region0: #{tpu_custom_call.1}
  #allocation0 [shape = 'u32[]', space=smem, size = 0x4, offset = 0x4, fixed_abs, tag = 'smem constant byte address 0x4 - core index']
  #allocation1 [shape = 'u32[144,128]{1,0:T(1,128)}', space=vmem, size = 0x12000, scoped, tag = 'internal scratch']
  %s0 = inlined_call_operand.hbm [shape: f32[8,16], index: 0, kind: input, shape index: {}]
  %s1 = inlined_call_operand.hbm [shape: f32[16,32], index: 1, kind: input, shape index: {}]
  %s2 = inlined_call_operand.vmem [shape: f32[1,32], index: 2, kind: input, shape index: {}]
  %s3 = inlined_call_operand.hbm [shape: f32[32,32], index: 3, kind: input, shape index: {}]
  %s4 = inlined_call_operand.vmem [shape: f32[1,32], index: 4, kind: input, shape index: {}]
  %s5 = inlined_call_operand.hbm [shape: f32[32,128], index: 5, kind: input, shape index: {}]
  %s6 = inlined_call_operand.vmem [shape: f32[1,128], index: 6, kind: input, shape index: {}]
  %s7 = inlined_call_operand.hbm [shape: f32[8,128], index: 7, kind: output, shape index: {}]
  %s8 = sld [smem:[#allocation0]]
  $region54: #{tpu_custom_call.1} parent=0
    _
  %s10 = ssub.s32 1, %s8
  %s11 = scalar_select 0, %s10, %s8
  $region1: #{tpu_custom_call.1} parent=0
    #allocation2 [shape = 'u8[4096]{0}', space=vmem, size = 0x1000, scoped, tag = 'input window, operand 0, single buffered']
    #allocation3 [shape = 's32[1]{0}', space=sflag, size = 0x4, scoped, tag = 'scoped memory for tpu_custom_call.1']
    #allocation4 [shape = 's32[1]{0}', space=sflag, size = 0x4, scoped, tag = 'scoped memory for tpu_custom_call.1']
    #allocation5 [shape = 'u8[8192]{0}', space=vmem, size = 0x2000, scoped, tag = 'input window, operand 1, single buffered']
    #allocation6 [shape = 's32[1]{0}', space=sflag, size = 0x4, scoped, tag = 'scoped memory for tpu_custom_call.1']
    #allocation7 [shape = 'u8[16384]{0}', space=vmem, size = 0x4000, scoped, tag = 'input window, operand 3, single buffered']
    #allocation8 [shape = 'u8[16384]{0}', space=vmem, size = 0x4000, scoped, tag = 'input window, operand 5, single buffered']
    #allocation9 [shape = 's32[1]{0}', space=sflag, size = 0x4, scoped, tag = 'scoped memory for tpu_custom_call.1']
    #allocation10 [shape = 'u8[4096]{0}', space=vmem, size = 0x1000, scoped, tag = 'output window, operand 0, single buffered']
    %12 = vsyncpa [#allocation3], 0
    %13 = vsyncpa [#allocation6], 0
    %14 = vsyncpa [#allocation9], 0
    %15 = vsyncpa [#allocation4], 0
    // Predicated region
    $region2: #{tpu_custom_call.1} parent=1 // pred_check
      _
    $region3: #{tpu_custom_call.1} parent=1 // pred_check_branch
      %17 = sbr.rel (0) target = $region5
    $region4: #{tpu_custom_call.1} parent=1 // pred_region
      %s19 = ssub.s32 128, 128
      %20 = vsyncadd [#allocation3], %s19
      %s22 = sshll.u32 [#allocation2], 4
      %s23 = int_to_ptr.vmem [resolvable:$true] %s22
      %25 = dma.hbm_to_vmem [thread:$0]  %s0, 128, %s23, [#allocation3]
    $region5: #{tpu_custom_call.1} parent=1 // pred_fallthru
      _
    // Predicated region
    $region6: #{tpu_custom_call.1} parent=1 // pred_check
      _
    $region7: #{tpu_custom_call.1} parent=1 // pred_check_branch
      %27 = sbr.rel (0) target = $region9
    $region8: #{tpu_custom_call.1} parent=1 // pred_region
      %s29 = ssub.s32 256, 256
      %30 = vsyncadd [#allocation6], %s29
      %s31 = sshll.u32 [#allocation5], 4
      %s32 = int_to_ptr.vmem [resolvable:$true] %s31
      %37 = dma.hbm_to_vmem [thread:$0]  %s1, 256, %s32, [#allocation6], 128, 128, 8
    $region9: #{tpu_custom_call.1} parent=1 // pred_fallthru
      _
    // Predicated region
    $region10: #{tpu_custom_call.1} parent=1 // pred_check
      _
    $region11: #{tpu_custom_call.1} parent=1 // pred_check_branch
      %39 = sbr.rel (0) target = $region13
    $region12: #{tpu_custom_call.1} parent=1 // pred_region
      _
    $region13: #{tpu_custom_call.1} parent=1 // pred_fallthru
      _
    // Predicated region
    $region14: #{tpu_custom_call.1} parent=1 // pred_check
      _
    $region15: #{tpu_custom_call.1} parent=1 // pred_check_branch
      %41 = sbr.rel (0) target = $region17
    $region16: #{tpu_custom_call.1} parent=1 // pred_region
      %s43 = ssub.s32 512, 512
      %44 = vsyncadd [#allocation6], %s43
      %s45 = sshll.u32 [#allocation7], 4
      %s46 = int_to_ptr.vmem [resolvable:$true] %s45
      %51 = dma.hbm_to_vmem [thread:$0]  %s3, 512, %s46, [#allocation6], 128, 128, 8
    $region17: #{tpu_custom_call.1} parent=1 // pred_fallthru
      _
    // Predicated region
    $region18: #{tpu_custom_call.1} parent=1 // pred_check
      _
    $region19: #{tpu_custom_call.1} parent=1 // pred_check_branch
      %53 = sbr.rel (0) target = $region21
    $region20: #{tpu_custom_call.1} parent=1 // pred_region
      _
    $region21: #{tpu_custom_call.1} parent=1 // pred_fallthru
      _
    // Predicated region
    $region22: #{tpu_custom_call.1} parent=1 // pred_check
      _
    $region23: #{tpu_custom_call.1} parent=1 // pred_check_branch
      %55 = sbr.rel (0) target = $region25
    $region24: #{tpu_custom_call.1} parent=1 // pred_region
      %s57 = ssub.s32 512, 512
      %58 = vsyncadd [#allocation9], %s57
      %s59 = sshll.u32 [#allocation8], 4
      %s60 = int_to_ptr.vmem [resolvable:$true] %s59
      %65 = dma.hbm_to_vmem [thread:$0]  %s5, 512, %s60, [#allocation9], 128, 128, 8
    $region25: #{tpu_custom_call.1} parent=1 // pred_fallthru
      _
    // Predicated region
    $region26: #{tpu_custom_call.1} parent=1 // pred_check
      _
    $region27: #{tpu_custom_call.1} parent=1 // pred_check_branch
      %67 = sbr.rel (0) target = $region29
    $region28: #{tpu_custom_call.1} parent=1 // pred_region
      _
    $region29: #{tpu_custom_call.1} parent=1 // pred_fallthru
      _
    // Predicated region
    $region30: #{tpu_custom_call.1} parent=1 // pred_check
      _
    $region31: #{tpu_custom_call.1} parent=1 // pred_check_branch
      %69 = sbr.rel (0) target = $region33
    $region32: #{tpu_custom_call.1} parent=1 // pred_region
      %70 = dma.done [#allocation3], 128
    $region33: #{tpu_custom_call.1} parent=1 // pred_fallthru
      _
    // Predicated region
    $region34: #{tpu_custom_call.1} parent=1 // pred_check
      _
    $region35: #{tpu_custom_call.1} parent=1 // pred_check_branch
      %72 = sbr.rel (0) target = $region37
    $region36: #{tpu_custom_call.1} parent=1 // pred_region
      %73 = dma.done [#allocation6], 256
    $region37: #{tpu_custom_call.1} parent=1 // pred_fallthru
      _
    // Predicated region
    $region38: #{tpu_custom_call.1} parent=1 // pred_check
      _
    $region39: #{tpu_custom_call.1} parent=1 // pred_check_branch
      %75 = sbr.rel (0) target = $region41
    $region40: #{tpu_custom_call.1} parent=1 // pred_region
      %76 = dma.done [#allocation6], 512
    $region41: #{tpu_custom_call.1} parent=1 // pred_fallthru
      _
    // Predicated region
    $region42: #{tpu_custom_call.1} parent=1 // pred_check
      _
    $region43: #{tpu_custom_call.1} parent=1 // pred_check_branch
      %78 = sbr.rel (0) target = $region45
    $region44: #{tpu_custom_call.1} parent=1 // pred_region
      %79 = dma.done [#allocation9], 512
    $region45: #{tpu_custom_call.1} parent=1 // pred_fallthru
      _
    %v80 = vld [vmem:[#allocation2] sm:$0xff]
    %v81 = vld [vmem:[#allocation5] sm:$0xff]
    %v82 = vld [vmem:[#allocation5 + $0x8] sm:$0xff]
    %v83 = vld [vmem:[%s2] sm:$0x1]
    %v85 = vlaneseq
    %v86 = vshrl.u32 %v85, 7
    %v87 = vsub.s32 0, %v86
    %v88 = vrot.slane %v83, %v87
    %vm90 = vcmask 130048
    %v92 = vsel %vm90, %v80, 0
    %94 = vmatprep.subr.mxu0 0.0
    %95 = vmatpush1.msra.mxu0 %v81
    %96 = vmatprep.subr.mxu0 0.0
    %97 = vmatpush1.msra.mxu0 %v82
    %98 = vmatprep.subr.mxu0 0.0
    %99 = vmatpush1.msra.mxu0 0.0
    %100 = vmatprep.subr.mxu0 0.0
    %101 = vmatpush1.msra.mxu0 0.0
    %102 = vmatprep.subr.mxu0 0.0
    %103 = vmatpush1.msra.mxu0 0.0
    %104 = vmatprep.subr.mxu0 0.0
    %105 = vmatpush1.msra.mxu0 0.0
    %106 = vmatprep.subr.mxu0 0.0
    %107 = vmatpush1.msra.mxu0 0.0
    %108 = vmatprep.subr.mxu0 0.0
    %109 = vmatpush1.msra.mxu0 0.0
    %110 = vmatprep.subr.mxu0 0.0
    %111 = vmatpush1.msra.mxu0 0.0
    %112 = vmatprep.subr.mxu0 0.0
    %113 = vmatpush1.msra.mxu0 0.0
    %114 = vmatprep.subr.mxu0 0.0
    %115 = vmatpush1.msra.mxu0 0.0
    %116 = vmatprep.subr.mxu0 0.0
    %117 = vmatpush1.msra.mxu0 0.0
    %118 = vmatprep.subr.mxu0 0.0
    %119 = vmatpush1.msra.mxu0 0.0
    %120 = vmatprep.subr.mxu0 0.0
    %121 = vmatpush1.msra.mxu0 0.0
    %122 = vmatprep.subr.mxu0 0.0
    %123 = vmatpush1.msra.mxu0 0.0
    %124 = vmatprep.subr.mxu0 0.0
    %125 = vmatpush1.msra.mxu0 0.0
    %126 = vmatprep.subr.mxu0 0.0
    %127 = vmatpush1.msra.mxu0 0.0
    %128 = vmatprep.subr.mxu0 0.0
    %129 = vmatpush1.msra.mxu0 0.0
    %130 = vmatprep.subr.mxu0 0.0
    %131 = vmatpush1.msra.mxu0 0.0
    %132 = vmatprep.subr.mxu0 0.0
    %133 = vmatpush1.msra.mxu0 0.0
    %134 = vmatprep.subr.mxu0 0.0
    %135 = vmatpush1.msra.mxu0 0.0
    %136 = vmatprep.subr.mxu0 0.0
    %137 = vmatpush1.msra.mxu0 0.0
    %138 = vmatprep.subr.mxu0 0.0
    %139 = vmatpush1.msra.mxu0 0.0
    %140 = vmatprep.subr.mxu0 0.0
    %141 = vmatpush1.msra.mxu0 0.0
    %142 = vmatprep.subr.mxu0 0.0
    %143 = vmatpush1.msra.mxu0 0.0
    %144 = vmatprep.subr.mxu0 0.0
    %145 = vmatpush1.msra.mxu0 0.0
    %146 = vmatprep.subr.mxu0 0.0
    %147 = vmatpush1.msra.mxu0 0.0
    %148 = vmatprep.subr.mxu0 0.0
    %149 = vmatpush1.msra.mxu0 0.0
    %150 = vmatprep.subr.mxu0 0.0
    %151 = vmatpush1.msra.mxu0 0.0
    %152 = vmatprep.subr.mxu0 0.0
    %153 = vmatpush1.msra.mxu0 0.0
    %154 = vmatprep.subr.mxu0 0.0
    %155 = vmatpush1.msra.mxu0 0.0
    %156 = vmatprep.subr.mxu0 0.0
    %157 = vmatpush1.msra.mxu0 0.0
    %158 = vmatprep.mubr.f32.mxu0 0.0
    %159 = vmatmul.mubr.f32.gmra.mrb[0].mxu0 %v92
    %v160 = vpop.f32.mrb[0].mxu0
    %v161 = vadd.f32 %v88, %v160
    %v162 = vpop.f32.mrb[0].mxu0
    %163 = vdwg.mxu0
    %v164 = vand.u32 2147483647, %v161
    %v165 = vsub.f32 0.0, %v164
    %v166 = vmul.f32 %v165, 1.442695
    %v167 = vpow.pop %v166
    %v168 = vmul.f32 %v167, %v167
    %vm169 = vcmp.ge.f32.partialorder %v161, 0.0
    %v170 = vmul.f32 %v167, 2.0
    %v171 = vadd.f32 %v170, 1.0
    %v172 = vadd.f32 %v168, %v170
    %v173 = vsel %vm169, %v171, %v172
    %v174 = vmul.f32 %v168, 2.0
    %v175 = vadd.f32 %v171, %v174
    %v176 = vadd.f32 %v172, 2.0
    %v177 = vsel %vm169, %v175, %v176
    %v178 = vmul.f32 %v161, %v173
    %v179 = vrcp.pop %v177
    %v180 = vmul.f32 %v178, %v179
    %v181 = vld [vmem:[#allocation7] sm:$0xff]
    %v182 = vld [vmem:[#allocation7 + $0x8] sm:$0xff]
    %v183 = vld [vmem:[#allocation7 + $0x10] sm:$0xff]
    %v184 = vld [vmem:[#allocation7 + $0x18] sm:$0xff]
    %v185 = vld [vmem:[%s4] sm:$0x1]
    %v187 = vlaneseq
    %v188 = vshrl.u32 %v187, 7
    %v189 = vsub.s32 0, %v188
    %v190 = vrot.slane %v185, %v189
    %vm192 = vcmask 261120
    %v194 = vsel %vm192, %v180, 0
    %196 = vmatprep.subr.mxu0 0.0
    %197 = vmatpush1.msra.mxu0 %v181
    %198 = vmatprep.subr.mxu0 0.0
    %199 = vmatpush1.msra.mxu0 %v182
    %200 = vmatprep.subr.mxu0 0.0
    %201 = vmatpush1.msra.mxu0 %v183
    %202 = vmatprep.subr.mxu0 0.0
    %203 = vmatpush1.msra.mxu0 %v184
    %204 = vmatprep.subr.mxu0 0.0
    %205 = vmatpush1.msra.mxu0 0.0
    %206 = vmatprep.subr.mxu0 0.0
    %207 = vmatpush1.msra.mxu0 0.0
    %208 = vmatprep.subr.mxu0 0.0
    %209 = vmatpush1.msra.mxu0 0.0
    %210 = vmatprep.subr.mxu0 0.0
    %211 = vmatpush1.msra.mxu0 0.0
    %212 = vmatprep.subr.mxu0 0.0
    %213 = vmatpush1.msra.mxu0 0.0
    %214 = vmatprep.subr.mxu0 0.0
    %215 = vmatpush1.msra.mxu0 0.0
    %216 = vmatprep.subr.mxu0 0.0
    %217 = vmatpush1.msra.mxu0 0.0
    %218 = vmatprep.subr.mxu0 0.0
    %219 = vmatpush1.msra.mxu0 0.0
    %220 = vmatprep.subr.mxu0 0.0
    %221 = vmatpush1.msra.mxu0 0.0
    %222 = vmatprep.subr.mxu0 0.0
    %223 = vmatpush1.msra.mxu0 0.0
    %224 = vmatprep.subr.mxu0 0.0
    %225 = vmatpush1.msra.mxu0 0.0
    %226 = vmatprep.subr.mxu0 0.0
    %227 = vmatpush1.msra.mxu0 0.0
    %228 = vmatprep.subr.mxu0 0.0
    %229 = vmatpush1.msra.mxu0 0.0
    %230 = vmatprep.subr.mxu0 0.0
    %231 = vmatpush1.msra.mxu0 0.0
    %232 = vmatprep.subr.mxu0 0.0
    %233 = vmatpush1.msra.mxu0 0.0
    %234 = vmatprep.subr.mxu0 0.0
    %235 = vmatpush1.msra.mxu0 0.0
    %236 = vmatprep.subr.mxu0 0.0
    %237 = vmatpush1.msra.mxu0 0.0
    %238 = vmatprep.subr.mxu0 0.0
    %239 = vmatpush1.msra.mxu0 0.0
    %240 = vmatprep.subr.mxu0 0.0
    %241 = vmatpush1.msra.mxu0 0.0
    %242 = vmatprep.subr.mxu0 0.0
    %243 = vmatpush1.msra.mxu0 0.0
    %244 = vmatprep.subr.mxu0 0.0
    %245 = vmatpush1.msra.mxu0 0.0
    %246 = vmatprep.subr.mxu0 0.0
    %247 = vmatpush1.msra.mxu0 0.0
    %248 = vmatprep.subr.mxu0 0.0
    %249 = vmatpush1.msra.mxu0 0.0
    %250 = vmatprep.subr.mxu0 0.0
    %251 = vmatpush1.msra.mxu0 0.0
    %252 = vmatprep.subr.mxu0 0.0
    %253 = vmatpush1.msra.mxu0 0.0
    %254 = vmatprep.subr.mxu0 0.0
    %255 = vmatpush1.msra.mxu0 0.0
    %256 = vmatprep.subr.mxu0 0.0
    %257 = vmatpush1.msra.mxu0 0.0
    %258 = vmatprep.subr.mxu0 0.0
    %259 = vmatpush1.msra.mxu0 0.0
    %260 = vmatprep.mubr.f32.mxu0 0.0
    %261 = vmatmul.mubr.f32.gmra.mrb[0].mxu0 %v194
    %v262 = vpop.f32.mrb[0].mxu0
    %v263 = vadd.f32 %v190, %v262
    %v264 = vpop.f32.mrb[0].mxu0
    %265 = vdwg.mxu0
    %v266 = vand.u32 2147483647, %v263
    %v267 = vsub.f32 0.0, %v266
    %v268 = vmul.f32 %v267, 1.442695
    %v269 = vpow.pop %v268
    %v270 = vmul.f32 %v269, %v269
    %vm271 = vcmp.ge.f32.partialorder %v263, 0.0
    %v272 = vmul.f32 %v269, 2.0
    %v273 = vadd.f32 %v272, 1.0
    %v274 = vadd.f32 %v270, %v272
    %v275 = vsel %vm271, %v273, %v274
    %v276 = vmul.f32 %v270, 2.0
    %v277 = vadd.f32 %v273, %v276
    %v278 = vadd.f32 %v274, 2.0
    %v279 = vsel %vm271, %v277, %v278
    %v280 = vmul.f32 %v263, %v275
    %v281 = vrcp.pop %v279
    %v282 = vmul.f32 %v280, %v281
    %v283 = vld [vmem:[#allocation8] sm:$0xff]
    %v284 = vld [vmem:[#allocation8 + $0x8] sm:$0xff]
    %v285 = vld [vmem:[#allocation8 + $0x10] sm:$0xff]
    %v286 = vld [vmem:[#allocation8 + $0x18] sm:$0xff]
    %v287 = vld [vmem:[%s6] sm:$0x1]
    %v289 = vlaneseq
    %v290 = vshrl.u32 %v289, 7
    %v291 = vsub.s32 0, %v290
    %v292 = vrot.slane %v287, %v291
    %v295 = vsel %vm192, %v282, 0
    %297 = vmatprep.subr.mxu0 0.0
    %298 = vmatpush1.msra.mxu0 %v283
    %299 = vmatprep.subr.mxu0 0.0
    %300 = vmatpush1.msra.mxu0 %v284
    %301 = vmatprep.subr.mxu0 0.0
    %302 = vmatpush1.msra.mxu0 %v285
    %303 = vmatprep.subr.mxu0 0.0
    %304 = vmatpush1.msra.mxu0 %v286
    %305 = vmatprep.subr.mxu0 0.0
    %306 = vmatpush1.msra.mxu0 0.0
    %307 = vmatprep.subr.mxu0 0.0
    %308 = vmatpush1.msra.mxu0 0.0
    %309 = vmatprep.subr.mxu0 0.0
    %310 = vmatpush1.msra.mxu0 0.0
    %311 = vmatprep.subr.mxu0 0.0
    %312 = vmatpush1.msra.mxu0 0.0
    %313 = vmatprep.subr.mxu0 0.0
    %314 = vmatpush1.msra.mxu0 0.0
    %315 = vmatprep.subr.mxu0 0.0
    %316 = vmatpush1.msra.mxu0 0.0
    %317 = vmatprep.subr.mxu0 0.0
    %318 = vmatpush1.msra.mxu0 0.0
    %319 = vmatprep.subr.mxu0 0.0
    %320 = vmatpush1.msra.mxu0 0.0
    %321 = vmatprep.subr.mxu0 0.0
    %322 = vmatpush1.msra.mxu0 0.0
    %323 = vmatprep.subr.mxu0 0.0
    %324 = vmatpush1.msra.mxu0 0.0
    %325 = vmatprep.subr.mxu0 0.0
    %326 = vmatpush1.msra.mxu0 0.0
    %327 = vmatprep.subr.mxu0 0.0
    %328 = vmatpush1.msra.mxu0 0.0
    %329 = vmatprep.subr.mxu0 0.0
    %330 = vmatpush1.msra.mxu0 0.0
    %331 = vmatprep.subr.mxu0 0.0
    %332 = vmatpush1.msra.mxu0 0.0
    %333 = vmatprep.subr.mxu0 0.0
    %334 = vmatpush1.msra.mxu0 0.0
    %335 = vmatprep.subr.mxu0 0.0
    %336 = vmatpush1.msra.mxu0 0.0
    %337 = vmatprep.subr.mxu0 0.0
    %338 = vmatpush1.msra.mxu0 0.0
    %339 = vmatprep.subr.mxu0 0.0
    %340 = vmatpush1.msra.mxu0 0.0
    %341 = vmatprep.subr.mxu0 0.0
    %342 = vmatpush1.msra.mxu0 0.0
    %343 = vmatprep.subr.mxu0 0.0
    %344 = vmatpush1.msra.mxu0 0.0
    %345 = vmatprep.subr.mxu0 0.0
    %346 = vmatpush1.msra.mxu0 0.0
    %347 = vmatprep.subr.mxu0 0.0
    %348 = vmatpush1.msra.mxu0 0.0
    %349 = vmatprep.subr.mxu0 0.0
    %350 = vmatpush1.msra.mxu0 0.0
    %351 = vmatprep.subr.mxu0 0.0
    %352 = vmatpush1.msra.mxu0 0.0
    %353 = vmatprep.subr.mxu0 0.0
    %354 = vmatpush1.msra.mxu0 0.0
    %355 = vmatprep.subr.mxu0 0.0
    %356 = vmatpush1.msra.mxu0 0.0
    %357 = vmatprep.subr.mxu0 0.0
    %358 = vmatpush1.msra.mxu0 0.0
    %359 = vmatprep.subr.mxu0 0.0
    %360 = vmatpush1.msra.mxu0 0.0
    %361 = vmatprep.mubr.f32.mxu0 0.0
    %362 = vmatmul.mubr.f32.gmra.mrb[0].mxu0 %v295
    %v363 = vpop.f32.mrb[0].mxu0
    %v364 = vadd.f32 %v292, %v363
    %v365 = vpop.f32.mrb[0].mxu0
    %366 = vdwg.mxu0
    %v367 = vmul.f32 %v364, 0.01
    %v368 = vmax.f32 %v364, %v367
    %v369 = vlaneseq
    %v370 = vand.u32 %v369, 127
    %vm371 = vcmp.lt.s32.totalorder %v370, 8
    %v372 = vsel %vm371, %v368, -1e+30
    %373 = vmax.xlane.f32.xlu0 %v372
    %v374 = vpop.xlane.xlu0 %373
    %v375 = vsub.f32 %v372, %v374
    %v376 = vmul.f32 %v375, 1.442695
    %v377 = vpow.pop %v376
    %378 = vadd.xlane.f32.xlu0 %v377
    %v379 = vpop.xlane.xlu0 %378
    %v380 = vrcp.pop %v379
    %v381 = vmul.f32 %v377, %v380
    %382 = vst [vmem:[#allocation10] sm:$0xff] %v381
    // Predicated region
    $region46: #{tpu_custom_call.1} parent=1 // pred_check
      _
    $region47: #{tpu_custom_call.1} parent=1 // pred_check_branch
      %384 = sbr.rel (0) target = $region49
    $region48: #{tpu_custom_call.1} parent=1 // pred_region
      %s386 = ssub.s32 128, 128
      %387 = vsyncadd [#allocation4], %s386
      %s389 = sshll.u32 [#allocation10], 4
      %s390 = int_to_ptr.vmem [resolvable:$true] %s389
      %392 = dma.vmem_to_hbm [thread:$0]  %s390, 128, %s7, [#allocation4]
    $region49: #{tpu_custom_call.1} parent=1 // pred_fallthru
      _
    // Predicated region
    $region50: #{tpu_custom_call.1} parent=1 // pred_check
      _
    $region51: #{tpu_custom_call.1} parent=1 // pred_check_branch
      %394 = sbr.rel (0) target = $region53
    $region52: #{tpu_custom_call.1} parent=1 // pred_region
      %395 = dma.done [#allocation4], 128
    $region53: #{tpu_custom_call.1} parent=1 // pred_fallthru
      _
    %396 = vsyncpa [#allocation3], 1
    %397 = vsyncpa [#allocation6], 1
    %398 = vsyncpa [#allocation9], 1
    %399 = vsyncpa [#allocation4], 1

// kernel: tpu_custom_call.1
$region0: #{tpu_custom_call.1}
  #allocation0 [shape = 'u32[]', space=smem, size = 0x4, offset = 0x4, fixed_abs, tag = 'smem constant byte address 0x4 - core index']
  #allocation1 [shape = 'u32[144,128]{1,0:T(1,128)}', space=vmem, size = 0x12000, scoped, tag = 'internal scratch']
  %s0 = inlined_call_operand.hbm [shape: f32[8,16], index: 0, kind: input, shape index: {}]
  %s1 = inlined_call_operand.hbm [shape: f32[16,32], index: 1, kind: input, shape index: {}]
  %s2 = inlined_call_operand.vmem [shape: f32[1,32], index: 2, kind: input, shape index: {}]
  %s3 = inlined_call_operand.hbm [shape: f32[32,32], index: 3, kind: input, shape index: {}]
  %s4 = inlined_call_operand.vmem [shape: f32[1,32], index: 4, kind: input, shape index: {}]
  %s5 = inlined_call_operand.hbm [shape: f32[32,128], index: 5, kind: input, shape index: {}]
  %s6 = inlined_call_operand.vmem [shape: f32[1,128], index: 6, kind: input, shape index: {}]
  %s7 = inlined_call_operand.hbm [shape: f32[8,128], index: 7, kind: output, shape index: {}]
  %s8 = sld [smem:[#allocation0]]
  $region54: #{tpu_custom_call.1} parent=0
    _
  %s10 = ssub.s32 1, %s8
  %s11 = scalar_select 0, %s10, %s8
  $region1: #{tpu_custom_call.1} parent=0
    #allocation2 [shape = 'u8[4096]{0}', space=vmem, size = 0x1000, scoped, tag = 'input window, operand 0, single buffered']
    #allocation3 [shape = 's32[1]{0}', space=sflag, size = 0x4, scoped, tag = 'scoped memory for tpu_custom_call.1']
    #allocation4 [shape = 's32[1]{0}', space=sflag, size = 0x4, scoped, tag = 'scoped memory for tpu_custom_call.1']
    #allocation5 [shape = 'u8[8192]{0}', space=vmem, size = 0x2000, scoped, tag = 'input window, operand 1, single buffered']
    #allocation6 [shape = 's32[1]{0}', space=sflag, size = 0x4, scoped, tag = 'scoped memory for tpu_custom_call.1']
    #allocation7 [shape = 'u8[16384]{0}', space=vmem, size = 0x4000, scoped, tag = 'input window, operand 3, single buffered']
    #allocation8 [shape = 'u8[16384]{0}', space=vmem, size = 0x4000, scoped, tag = 'input window, operand 5, single buffered']
    #allocation9 [shape = 's32[1]{0}', space=sflag, size = 0x4, scoped, tag = 'scoped memory for tpu_custom_call.1']
    #allocation10 [shape = 'u8[4096]{0}', space=vmem, size = 0x1000, scoped, tag = 'output window, operand 0, single buffered']
    %12 = vsyncpa [#allocation3], 0
    %13 = vsyncpa [#allocation6], 0
    %14 = vsyncpa [#allocation9], 0
    %15 = vsyncpa [#allocation4], 0
    // Predicated region
    $region2: #{tpu_custom_call.1} parent=1 // pred_check
      _
    $region3: #{tpu_custom_call.1} parent=1 // pred_check_branch
      %17 = sbr.rel (0) target = $region5
    $region4: #{tpu_custom_call.1} parent=1 // pred_region
      %s19 = ssub.s32 128, 128
      %20 = vsyncadd [#allocation3], %s19
      %s22 = sshll.u32 [#allocation2], 4
      %s23 = int_to_ptr.vmem [resolvable:$true] %s22
      %25 = dma.hbm_to_vmem [thread:$0]  %s0, 128, %s23, [#allocation3]
    $region5: #{tpu_custom_call.1} parent=1 // pred_fallthru
      _
    // Predicated region
    $region6: #{tpu_custom_call.1} parent=1 // pred_check
      _
    $region7: #{tpu_custom_call.1} parent=1 // pred_check_branch
      %27 = sbr.rel (0) target = $region9
    $region8: #{tpu_custom_call.1} parent=1 // pred_region
      %s29 = ssub.s32 256, 256
      %30 = vsyncadd [#allocation6], %s29
      %s31 = sshll.u32 [#allocation5], 4
      %s32 = int_to_ptr.vmem [resolvable:$true] %s31
      %37 = dma.hbm_to_vmem [thread:$0]  %s1, 256, %s32, [#allocation6], 128, 128, 8
    $region9: #{tpu_custom_call.1} parent=1 // pred_fallthru
      _
    // Predicated region
    $region10: #{tpu_custom_call.1} parent=1 // pred_check
      _
    $region11: #{tpu_custom_call.1} parent=1 // pred_check_branch
      %39 = sbr.rel (0) target = $region13
    $region12: #{tpu_custom_call.1} parent=1 // pred_region
      _
    $region13: #{tpu_custom_call.1} parent=1 // pred_fallthru
      _
    // Predicated region
    $region14: #{tpu_custom_call.1} parent=1 // pred_check
      _
    $region15: #{tpu_custom_call.1} parent=1 // pred_check_branch
      %41 = sbr.rel (0) target = $region17
    $region16: #{tpu_custom_call.1} parent=1 // pred_region
      %s43 = ssub.s32 512, 512
      %44 = vsyncadd [#allocation6], %s43
      %s45 = sshll.u32 [#allocation7], 4
      %s46 = int_to_ptr.vmem [resolvable:$true] %s45
      %51 = dma.hbm_to_vmem [thread:$0]  %s3, 512, %s46, [#allocation6], 128, 128, 8
    $region17: #{tpu_custom_call.1} parent=1 // pred_fallthru
      _
    // Predicated region
    $region18: #{tpu_custom_call.1} parent=1 // pred_check
      _
    $region19: #{tpu_custom_call.1} parent=1 // pred_check_branch
      %53 = sbr.rel (0) target = $region21
    $region20: #{tpu_custom_call.1} parent=1 // pred_region
      _
    $region21: #{tpu_custom_call.1} parent=1 // pred_fallthru
      _
    // Predicated region
    $region22: #{tpu_custom_call.1} parent=1 // pred_check
      _
    $region23: #{tpu_custom_call.1} parent=1 // pred_check_branch
      %55 = sbr.rel (0) target = $region25
    $region24: #{tpu_custom_call.1} parent=1 // pred_region
      %s57 = ssub.s32 512, 512
      %58 = vsyncadd [#allocation9], %s57
      %s59 = sshll.u32 [#allocation8], 4
      %s60 = int_to_ptr.vmem [resolvable:$true] %s59
      %65 = dma.hbm_to_vmem [thread:$0]  %s5, 512, %s60, [#allocation9], 128, 128, 8
    $region25: #{tpu_custom_call.1} parent=1 // pred_fallthru
      _
    // Predicated region
    $region26: #{tpu_custom_call.1} parent=1 // pred_check
      _
    $region27: #{tpu_custom_call.1} parent=1 // pred_check_branch
      %67 = sbr.rel (0) target = $region29
    $region28: #{tpu_custom_call.1} parent=1 // pred_region
      _
    $region29: #{tpu_custom_call.1} parent=1 // pred_fallthru
      _
    // Predicated region
    $region30: #{tpu_custom_call.1} parent=1 // pred_check
      _
    $region31: #{tpu_custom_call.1} parent=1 // pred_check_branch
      %69 = sbr.rel (0) target = $region33
    $region32: #{tpu_custom_call.1} parent=1 // pred_region
      %70 = dma.done [#allocation3], 128
    $region33: #{tpu_custom_call.1} parent=1 // pred_fallthru
      _
    // Predicated region
    $region34: #{tpu_custom_call.1} parent=1 // pred_check
      _
    $region35: #{tpu_custom_call.1} parent=1 // pred_check_branch
      %72 = sbr.rel (0) target = $region37
    $region36: #{tpu_custom_call.1} parent=1 // pred_region
      %73 = dma.done [#allocation6], 256
    $region37: #{tpu_custom_call.1} parent=1 // pred_fallthru
      _
    // Predicated region
    $region38: #{tpu_custom_call.1} parent=1 // pred_check
      _
    $region39: #{tpu_custom_call.1} parent=1 // pred_check_branch
      %75 = sbr.rel (0) target = $region41
    $region40: #{tpu_custom_call.1} parent=1 // pred_region
      %76 = dma.done [#allocation6], 512
    $region41: #{tpu_custom_call.1} parent=1 // pred_fallthru
      _
    // Predicated region
    $region42: #{tpu_custom_call.1} parent=1 // pred_check
      _
    $region43: #{tpu_custom_call.1} parent=1 // pred_check_branch
      %78 = sbr.rel (0) target = $region45
    $region44: #{tpu_custom_call.1} parent=1 // pred_region
      %79 = dma.done [#allocation9], 512
    $region45: #{tpu_custom_call.1} parent=1 // pred_fallthru
      _
    %v80 = vld [vmem:[#allocation2] sm:$0xff]
    %v81 = vld [vmem:[#allocation5] sm:$0xff]
    %v82 = vld [vmem:[#allocation5 + $0x8] sm:$0xff]
    %v83 = vld [vmem:[%s2] sm:$0x1]
    %v85 = vlaneseq
    %v86 = vshrl.u32 %v85, 7
    %v87 = vsub.s32 0, %v86
    %v88 = vrot.slane %v83, %v87
    %vm90 = vcmask 130048
    %v92 = vsel %vm90, %v80, 0
    %94 = vmatprep.subr.mxu0 0.0
    %95 = vmatpush1.msra.mxu0 %v81
    %96 = vmatprep.subr.mxu0 0.0
    %97 = vmatpush1.msra.mxu0 %v82
    %98 = vmatprep.subr.mxu0 0.0
    %99 = vmatpush1.msra.mxu0 0.0
    %100 = vmatprep.subr.mxu0 0.0
    %101 = vmatpush1.msra.mxu0 0.0
    %102 = vmatprep.subr.mxu0 0.0
    %103 = vmatpush1.msra.mxu0 0.0
    %104 = vmatprep.subr.mxu0 0.0
    %105 = vmatpush1.msra.mxu0 0.0
    %106 = vmatprep.subr.mxu0 0.0
    %107 = vmatpush1.msra.mxu0 0.0
    %108 = vmatprep.subr.mxu0 0.0
    %109 = vmatpush1.msra.mxu0 0.0
    %110 = vmatprep.subr.mxu0 0.0
    %111 = vmatpush1.msra.mxu0 0.0
    %112 = vmatprep.subr.mxu0 0.0
    %113 = vmatpush1.msra.mxu0 0.0
    %114 = vmatprep.subr.mxu0 0.0
    %115 = vmatpush1.msra.mxu0 0.0
    %116 = vmatprep.subr.mxu0 0.0
    %117 = vmatpush1.msra.mxu0 0.0
    %118 = vmatprep.subr.mxu0 0.0
    %119 = vmatpush1.msra.mxu0 0.0
    %120 = vmatprep.subr.mxu0 0.0
    %121 = vmatpush1.msra.mxu0 0.0
    %122 = vmatprep.subr.mxu0 0.0
    %123 = vmatpush1.msra.mxu0 0.0
    %124 = vmatprep.subr.mxu0 0.0
    %125 = vmatpush1.msra.mxu0 0.0
    %126 = vmatprep.subr.mxu0 0.0
    %127 = vmatpush1.msra.mxu0 0.0
    %128 = vmatprep.subr.mxu0 0.0
    %129 = vmatpush1.msra.mxu0 0.0
    %130 = vmatprep.subr.mxu0 0.0
    %131 = vmatpush1.msra.mxu0 0.0
    %132 = vmatprep.subr.mxu0 0.0
    %133 = vmatpush1.msra.mxu0 0.0
    %134 = vmatprep.subr.mxu0 0.0
    %135 = vmatpush1.msra.mxu0 0.0
    %136 = vmatprep.subr.mxu0 0.0
    %137 = vmatpush1.msra.mxu0 0.0
    %138 = vmatprep.subr.mxu0 0.0
    %139 = vmatpush1.msra.mxu0 0.0
    %140 = vmatprep.subr.mxu0 0.0
    %141 = vmatpush1.msra.mxu0 0.0
    %142 = vmatprep.subr.mxu0 0.0
    %143 = vmatpush1.msra.mxu0 0.0
    %144 = vmatprep.subr.mxu0 0.0
    %145 = vmatpush1.msra.mxu0 0.0
    %146 = vmatprep.subr.mxu0 0.0
    %147 = vmatpush1.msra.mxu0 0.0
    %148 = vmatprep.subr.mxu0 0.0
    %149 = vmatpush1.msra.mxu0 0.0
    %150 = vmatprep.subr.mxu0 0.0
    %151 = vmatpush1.msra.mxu0 0.0
    %152 = vmatprep.subr.mxu0 0.0
    %153 = vmatpush1.msra.mxu0 0.0
    %154 = vmatprep.subr.mxu0 0.0
    %155 = vmatpush1.msra.mxu0 0.0
    %156 = vmatprep.subr.mxu0 0.0
    %157 = vmatpush1.msra.mxu0 0.0
    %158 = vmatprep.mubr.f32.mxu0 0.0
    %159 = vmatmul.mubr.f32.gmra.mrb[0].mxu0 %v92
    %v160 = vpop.f32.mrb[0].mxu0
    %v161 = vadd.f32 %v88, %v160
    %v162 = vpop.f32.mrb[0].mxu0
    %163 = vdwg.mxu0
    %v164 = vand.u32 2147483647, %v161
    %v165 = vsub.f32 0.0, %v164
    %v166 = vmul.f32 %v165, 1.442695
    %v167 = vpow.pop %v166
    %v168 = vmul.f32 %v167, %v167
    %vm169 = vcmp.ge.f32.partialorder %v161, 0.0
    %v170 = vmul.f32 %v167, 2.0
    %v171 = vadd.f32 %v170, 1.0
    %v172 = vadd.f32 %v168, %v170
    %v173 = vsel %vm169, %v171, %v172
    %v174 = vmul.f32 %v168, 2.0
    %v175 = vadd.f32 %v171, %v174
    %v176 = vadd.f32 %v172, 2.0
    %v177 = vsel %vm169, %v175, %v176
    %v178 = vmul.f32 %v161, %v173
    %v179 = vrcp.pop %v177
    %v180 = vmul.f32 %v178, %v179
    %v181 = vld [vmem:[#allocation7] sm:$0xff]
    %v182 = vld [vmem:[#allocation7 + $0x8] sm:$0xff]
    %v183 = vld [vmem:[#allocation7 + $0x10] sm:$0xff]
    %v184 = vld [vmem:[#allocation7 + $0x18] sm:$0xff]
    %v185 = vld [vmem:[%s4] sm:$0x1]
    %v187 = vlaneseq
    %v188 = vshrl.u32 %v187, 7
    %v189 = vsub.s32 0, %v188
    %v190 = vrot.slane %v185, %v189
    %vm192 = vcmask 261120
    %v194 = vsel %vm192, %v180, 0
    %196 = vmatprep.subr.mxu0 0.0
    %197 = vmatpush1.msra.mxu0 %v181
    %198 = vmatprep.subr.mxu0 0.0
    %199 = vmatpush1.msra.mxu0 %v182
    %200 = vmatprep.subr.mxu0 0.0
    %201 = vmatpush1.msra.mxu0 %v183
    %202 = vmatprep.subr.mxu0 0.0
    %203 = vmatpush1.msra.mxu0 %v184
    %204 = vmatprep.subr.mxu0 0.0
    %205 = vmatpush1.msra.mxu0 0.0
    %206 = vmatprep.subr.mxu0 0.0
    %207 = vmatpush1.msra.mxu0 0.0
    %208 = vmatprep.subr.mxu0 0.0
    %209 = vmatpush1.msra.mxu0 0.0
    %210 = vmatprep.subr.mxu0 0.0
    %211 = vmatpush1.msra.mxu0 0.0
    %212 = vmatprep.subr.mxu0 0.0
    %213 = vmatpush1.msra.mxu0 0.0
    %214 = vmatprep.subr.mxu0 0.0
    %215 = vmatpush1.msra.mxu0 0.0
    %216 = vmatprep.subr.mxu0 0.0
    %217 = vmatpush1.msra.mxu0 0.0
    %218 = vmatprep.subr.mxu0 0.0
    %219 = vmatpush1.msra.mxu0 0.0
    %220 = vmatprep.subr.mxu0 0.0
    %221 = vmatpush1.msra.mxu0 0.0
    %222 = vmatprep.subr.mxu0 0.0
    %223 = vmatpush1.msra.mxu0 0.0
    %224 = vmatprep.subr.mxu0 0.0
    %225 = vmatpush1.msra.mxu0 0.0
    %226 = vmatprep.subr.mxu0 0.0
    %227 = vmatpush1.msra.mxu0 0.0
    %228 = vmatprep.subr.mxu0 0.0
    %229 = vmatpush1.msra.mxu0 0.0
    %230 = vmatprep.subr.mxu0 0.0
    %231 = vmatpush1.msra.mxu0 0.0
    %232 = vmatprep.subr.mxu0 0.0
    %233 = vmatpush1.msra.mxu0 0.0
    %234 = vmatprep.subr.mxu0 0.0
    %235 = vmatpush1.msra.mxu0 0.0
    %236 = vmatprep.subr.mxu0 0.0
    %237 = vmatpush1.msra.mxu0 0.0
    %238 = vmatprep.subr.mxu0 0.0
    %239 = vmatpush1.msra.mxu0 0.0
    %240 = vmatprep.subr.mxu0 0.0
    %241 = vmatpush1.msra.mxu0 0.0
    %242 = vmatprep.subr.mxu0 0.0
    %243 = vmatpush1.msra.mxu0 0.0
    %244 = vmatprep.subr.mxu0 0.0
    %245 = vmatpush1.msra.mxu0 0.0
    %246 = vmatprep.subr.mxu0 0.0
    %247 = vmatpush1.msra.mxu0 0.0
    %248 = vmatprep.subr.mxu0 0.0
    %249 = vmatpush1.msra.mxu0 0.0
    %250 = vmatprep.subr.mxu0 0.0
    %251 = vmatpush1.msra.mxu0 0.0
    %252 = vmatprep.subr.mxu0 0.0
    %253 = vmatpush1.msra.mxu0 0.0
    %254 = vmatprep.subr.mxu0 0.0
    %255 = vmatpush1.msra.mxu0 0.0
    %256 = vmatprep.subr.mxu0 0.0
    %257 = vmatpush1.msra.mxu0 0.0
    %258 = vmatprep.subr.mxu0 0.0
    %259 = vmatpush1.msra.mxu0 0.0
    %260 = vmatprep.mubr.f32.mxu0 0.0
    %261 = vmatmul.mubr.f32.gmra.mrb[0].mxu0 %v194
    %v262 = vpop.f32.mrb[0].mxu0
    %v263 = vadd.f32 %v190, %v262
    %v264 = vpop.f32.mrb[0].mxu0
    %265 = vdwg.mxu0
    %v266 = vand.u32 2147483647, %v263
    %v267 = vsub.f32 0.0, %v266
    %v268 = vmul.f32 %v267, 1.442695
    %v269 = vpow.pop %v268
    %v270 = vmul.f32 %v269, %v269
    %vm271 = vcmp.ge.f32.partialorder %v263, 0.0
    %v272 = vmul.f32 %v269, 2.0
    %v273 = vadd.f32 %v272, 1.0
    %v274 = vadd.f32 %v270, %v272
    %v275 = vsel %vm271, %v273, %v274
    %v276 = vmul.f32 %v270, 2.0
    %v277 = vadd.f32 %v273, %v276
    %v278 = vadd.f32 %v274, 2.0
    %v279 = vsel %vm271, %v277, %v278
    %v280 = vmul.f32 %v263, %v275
    %v281 = vrcp.pop %v279
    %v282 = vmul.f32 %v280, %v281
    %v283 = vld [vmem:[#allocation8] sm:$0xff]
    %v284 = vld [vmem:[#allocation8 + $0x8] sm:$0xff]
    %v285 = vld [vmem:[#allocation8 + $0x10] sm:$0xff]
    %v286 = vld [vmem:[#allocation8 + $0x18] sm:$0xff]
    %v287 = vld [vmem:[%s6] sm:$0x1]
    %v289 = vlaneseq
    %v290 = vshrl.u32 %v289, 7
    %v291 = vsub.s32 0, %v290
    %v292 = vrot.slane %v287, %v291
    %v295 = vsel %vm192, %v282, 0
    %297 = vmatprep.subr.mxu0 0.0
    %298 = vmatpush1.msra.mxu0 %v283
    %299 = vmatprep.subr.mxu0 0.0
    %300 = vmatpush1.msra.mxu0 %v284
    %301 = vmatprep.subr.mxu0 0.0
    %302 = vmatpush1.msra.mxu0 %v285
    %303 = vmatprep.subr.mxu0 0.0
    %304 = vmatpush1.msra.mxu0 %v286
    %305 = vmatprep.subr.mxu0 0.0
    %306 = vmatpush1.msra.mxu0 0.0
    %307 = vmatprep.subr.mxu0 0.0
    %308 = vmatpush1.msra.mxu0 0.0
    %309 = vmatprep.subr.mxu0 0.0
    %310 = vmatpush1.msra.mxu0 0.0
    %311 = vmatprep.subr.mxu0 0.0
    %312 = vmatpush1.msra.mxu0 0.0
    %313 = vmatprep.subr.mxu0 0.0
    %314 = vmatpush1.msra.mxu0 0.0
    %315 = vmatprep.subr.mxu0 0.0
    %316 = vmatpush1.msra.mxu0 0.0
    %317 = vmatprep.subr.mxu0 0.0
    %318 = vmatpush1.msra.mxu0 0.0
    %319 = vmatprep.subr.mxu0 0.0
    %320 = vmatpush1.msra.mxu0 0.0
    %321 = vmatprep.subr.mxu0 0.0
    %322 = vmatpush1.msra.mxu0 0.0
    %323 = vmatprep.subr.mxu0 0.0
    %324 = vmatpush1.msra.mxu0 0.0
    %325 = vmatprep.subr.mxu0 0.0
    %326 = vmatpush1.msra.mxu0 0.0
    %327 = vmatprep.subr.mxu0 0.0
    %328 = vmatpush1.msra.mxu0 0.0
    %329 = vmatprep.subr.mxu0 0.0
    %330 = vmatpush1.msra.mxu0 0.0
    %331 = vmatprep.subr.mxu0 0.0
    %332 = vmatpush1.msra.mxu0 0.0
    %333 = vmatprep.subr.mxu0 0.0
    %334 = vmatpush1.msra.mxu0 0.0
    %335 = vmatprep.subr.mxu0 0.0
    %336 = vmatpush1.msra.mxu0 0.0
    %337 = vmatprep.subr.mxu0 0.0
    %338 = vmatpush1.msra.mxu0 0.0
    %339 = vmatprep.subr.mxu0 0.0
    %340 = vmatpush1.msra.mxu0 0.0
    %341 = vmatprep.subr.mxu0 0.0
    %342 = vmatpush1.msra.mxu0 0.0
    %343 = vmatprep.subr.mxu0 0.0
    %344 = vmatpush1.msra.mxu0 0.0
    %345 = vmatprep.subr.mxu0 0.0
    %346 = vmatpush1.msra.mxu0 0.0
    %347 = vmatprep.subr.mxu0 0.0
    %348 = vmatpush1.msra.mxu0 0.0
    %349 = vmatprep.subr.mxu0 0.0
    %350 = vmatpush1.msra.mxu0 0.0
    %351 = vmatprep.subr.mxu0 0.0
    %352 = vmatpush1.msra.mxu0 0.0
    %353 = vmatprep.subr.mxu0 0.0
    %354 = vmatpush1.msra.mxu0 0.0
    %355 = vmatprep.subr.mxu0 0.0
    %356 = vmatpush1.msra.mxu0 0.0
    %357 = vmatprep.subr.mxu0 0.0
    %358 = vmatpush1.msra.mxu0 0.0
    %359 = vmatprep.subr.mxu0 0.0
    %360 = vmatpush1.msra.mxu0 0.0
    %361 = vmatprep.mubr.f32.mxu0 0.0
    %362 = vmatmul.mubr.f32.gmra.mrb[0].mxu0 %v295
    %v363 = vpop.f32.mrb[0].mxu0
    %v364 = vadd.f32 %v292, %v363
    %v365 = vpop.f32.mrb[0].mxu0
    %366 = vdwg.mxu0
    %v367 = vmul.f32 %v364, 0.01
    %v368 = vmax.f32 %v364, %v367
    %v369 = vlaneseq
    %v370 = vand.u32 %v369, 127
    %vm371 = vcmp.lt.s32.totalorder %v370, 8
    %v372 = vsel %vm371, %v368, -1e+30
    %373 = vmax.xlane.f32.xlu0 %v372
    %v374 = vpop.xlane.xlu0 %373
    %v375 = vsub.f32 %v372, %v374
    %v376 = vmul.f32 %v375, 1.442695
    %v377 = vpow.pop %v376
    %378 = vadd.xlane.f32.xlu0 %v377
    %v379 = vpop.xlane.xlu0 %378
    %v380 = vrcp.pop %v379
    %v381 = vmul.f32 %v377, %v380
    %382 = vst [vmem:[#allocation10] sm:$0xff] %v381
    // Predicated region
    $region46: #{tpu_custom_call.1} parent=1 // pred_check
      _
    $region47: #{tpu_custom_call.1} parent=1 // pred_check_branch
      %384 = sbr.rel (0) target = $region49
    $region48: #{tpu_custom_call.1} parent=1 // pred_region
      %s386 = ssub.s32 128, 128
      %387 = vsyncadd [#allocation4], %s386
      %s389 = sshll.u32 [#allocation10], 4
      %s390 = int_to_ptr.vmem [resolvable:$true] %s389
      %392 = dma.vmem_to_hbm [thread:$0]  %s390, 128, %s7, [#allocation4]
    $region49: #{tpu_custom_call.1} parent=1 // pred_fallthru
      _
    // Predicated region
    $region50: #{tpu_custom_call.1} parent=1 // pred_check
      _
    $region51: #{tpu_custom_call.1} parent=1 // pred_check_branch
      %394 = sbr.rel (0) target = $region53
    $region52: #{tpu_custom_call.1} parent=1 // pred_region
      %395 = dma.done [#allocation4], 128
    $region53: #{tpu_custom_call.1} parent=1 // pred_fallthru
      _
    %396 = vsyncpa [#allocation3], 1
    %397 = vsyncpa [#allocation6], 1
    %398 = vsyncpa [#allocation9], 1
    %399 = vsyncpa [#allocation4], 1

</llo_original>
